<compile_context>
chip_gen: v7x
topology: tpu7x:2x2x1
jax: 0.10.0
libtpu: 0.0.40
codegen_flags: <defaults>
</compile_context>

<pallas_src>
from functools import partial

import jax
import jax.numpy as jnp
from jax.experimental import pallas as pl
from jax.experimental.pallas import tpu as pltpu


# ----------------------------------------------------------------------------
# Tile-size selection
# ----------------------------------------------------------------------------
def _choose_tile_m(L, B, K, N, itemsize, *, target=8192, min_tile=512,
                   min_blocks=4, vmem_budget=24 * 1024 * 1024):
    """Pick the L-tile (rows of patches per grid step).

    As large as possible to amortize the ~0.35us/step pipeline overhead, but:
      * double-buffered (patches + output) blocks must fit in `vmem_budget`
        (comfortably below the 32 MiB scoped default; v7x physical VMEM is
        only 64 MiB),
      * leave at least `min_blocks` grid blocks in total so both v7x
        TensorCores get >= 2 blocks each,
      * tiles that do not cover the whole L axis are multiples of 128 so the
        output stores stay lane-dense and blocks stay (8,128)-legal.
    """
    per_row = 2 * (K + N) * itemsize                      # dbl-buffered bytes/row
    vmem_cap = max(128, (vmem_budget // per_row) // 128 * 128)
    target = max(min(target, vmem_cap), 128)
    min_tile = min(min_tile, target)

    if L <= min_tile:
        return L                      # tiny problem: one block per image
    if L <= target and B >= min_blocks:
        return L                      # enough images to feed both v7x TCs

    tile = min(target, max((L // 128) * 128, 128))
    while tile > min_tile and B * pl.cdiv(L, tile) < min_blocks:
        tile = max(min_tile, ((tile // 2) // 128) * 128)
    return tile


# ----------------------------------------------------------------------------
# Pallas kernel: transposed-output projection   out_blk = W @ patches^T + b
# ----------------------------------------------------------------------------
def _patch_proj_kernel(p_ref, wt_ref, b_ref, o_ref):
    # p_ref : (tile_m, K)   flattened patches for one (batch, row-block)
    # wt_ref: (N, K)        conv weight in PyTorch (out, in*kh*kw) flatten order
    # b_ref : (N, 1)        conv bias as a column
    # o_ref : (N, tile_m)   output block, already channel-major (NCHW layout)
    acc = jnp.dot(wt_ref[...], p_ref[...].T,
                  preferred_element_type=jnp.float32)      # (N, tile_m) f32
    o_ref[...] = (acc + b_ref[...]).astype(o_ref.dtype)


def patch_proj(patches, wt, bcol, *, tile_m=None):
    """patches: (B, L, K); wt: (N, K); bcol: (N, 1)  ->  (B, N, L)."""
    B, L, K = patches.shape
    N = wt.shape[0]
    itemsize = jnp.dtype(patches.dtype).itemsize

    if tile_m is None:
        tile_m = _choose_tile_m(L, B, K, N, itemsize)
    tile_m = max(1, min(tile_m, L))
    nblk = pl.cdiv(L, tile_m)         # ragged last block handled by Pallas

    cost = pl.CostEstimate(
        flops=2 * B * L * K * N,
        transcendentals=0,
        bytes_accessed=(B * L * K + K * N + N + B * L * N) * itemsize,
    )

    return pl.pallas_call(
        _patch_proj_kernel,
        out_shape=jax.ShapeDtypeStruct((B, N, L), patches.dtype),
        grid_spec=pltpu.PrefetchScalarGridSpec(
            num_scalar_prefetch=0,
            grid=(B, nblk),
            in_specs=[
                # Patches: one (tile_m, K) row block per grid step.
                pl.BlockSpec((None, tile_m, K), lambda b, i: (b, i, 0)),
                # Weight / bias: constant index maps -> fetched once, no
                # per-step re-DMA.
                pl.BlockSpec((N, K), lambda b, i: (0, 0)),
                pl.BlockSpec((N, 1), lambda b, i: (0, 0)),
            ],
            # Transposed output block: channels on sublanes, sequence positions
            # (tile_m, multiple of 128) on lanes -> lane-dense stores, and the
            # (B, N, L) result is already NCHW-ordered.
            out_specs=pl.BlockSpec((None, N, tile_m), lambda b, i: (b, 0, i)),
        ),
        compiler_params=pltpu.CompilerParams(
            dimension_semantics=("parallel", "parallel"),
            # Let XLA fuse the patch-extraction reshape/transpose into the
            # patches operand instead of materializing it in HBM (best effort).
            allow_input_fusion=[True, False, False],
            vmem_limit_bytes=32 * 1024 * 1024,
        ),
        cost_estimate=cost,
    )(patches, wt, bcol)


# ----------------------------------------------------------------------------
# PatchEmbed forward (glue in plain JAX, projection in Pallas)
# ----------------------------------------------------------------------------
@partial(jax.jit, static_argnames=("patch_size", "tile_m"))
def patch_embed_forward(x, conv_weight, conv_bias, *, patch_size, tile_m=None):
    """
    x           : (B, C, H, W)  NCHW
    conv_weight : (embed_dim, C, ph, pw)   (PyTorch Conv2d layout)
    conv_bias   : (embed_dim,)
    returns     : (B, embed_dim, Wh, Ww)
    """
    ph, pw = patch_size
    B, C, H, W = x.shape
    embed_dim = conv_weight.shape[0]

    # Same padding semantics as the PyTorch module (pad right / bottom only).
    if W % pw != 0:
        x = jnp.pad(x, ((0, 0), (0, 0), (0, 0), (0, pw - W % pw)))
    if H % ph != 0:
        x = jnp.pad(x, ((0, 0), (0, 0), (0, ph - H % ph), (0, 0)))
    Hp, Wp = x.shape[2], x.shape[3]
    Wh, Ww = Hp // ph, Wp // pw
    L = Wh * Ww
    K = C * ph * pw

    # Patch extraction: K ordered (C, ph, pw) to match Conv2d's weight flatten
    # order.  allow_input_fusion on the pallas_call lets XLA compute this
    # per-block instead of writing the full patch tensor to HBM (best effort).
    xp = x.reshape(B, C, Wh, ph, Ww, pw)
    xp = jnp.transpose(xp, (0, 2, 4, 1, 3, 5))
    patches = xp.reshape(B, L, K)

    wt = conv_weight.reshape(embed_dim, K).astype(x.dtype)     # (N, K)
    bcol = conv_bias.reshape(embed_dim, 1).astype(x.dtype)     # (N, 1)

    out = patch_proj(patches, wt, bcol, tile_m=tile_m)         # (B, N, L)

    # NCHW restore is now a pure (free) reshape -- no transpose pass.
    return out.reshape(B, embed_dim, Wh, Ww)


# ----------------------------------------------------------------------------
# Demo / self-check
# ----------------------------------------------------------------------------
if __name__ == "__main__":
    key = jax.random.PRNGKey(0)
    k_x, k_w, k_b, k_x2 = jax.random.split(key, 4)

    # Small shapes consistent with the module: patch_size=4, in_chans=4,
    # embed_dim=32, spatial 16x16, batch 2.
    patch_size = (4, 4)
    B, C, H, W = 2, 4, 16, 16
    embed_dim = 32

    x = jax.random.normal(k_x, (B, C, H, W), dtype=jnp.float32)
    conv_weight = jax.random.normal(
        k_w, (embed_dim, C, *patch_size), dtype=jnp.float32) * 0.05
    conv_bias = jax.random.normal(k_b, (embed_dim,), dtype=jnp.float32) * 0.05

    out = patch_embed_forward(x, conv_weight, conv_bias, patch_size=patch_size)
    out = jax.block_until_ready(out)

    # Reference: plain-JAX strided conv (== nn.Conv2d with stride=kernel).
    ref = jax.lax.conv_general_dilated(
        x, conv_weight, window_strides=patch_size, padding="VALID",
        dimension_numbers=("NCHW", "OIHW", "NCHW"),
    ) + conv_bias.reshape(1, embed_dim, 1, 1)

    assert out.shape == (B, embed_dim, H // patch_size[0], W // patch_size[1])
    assert jnp.allclose(out, ref, atol=1e-4, rtol=1e-4)

    # Non-divisible spatial size exercises the pad-right / pad-bottom branch.
    H2, W2 = 18, 18
    x2 = jax.random.normal(k_x2, (B, C, H2, W2), dtype=jnp.float32)
    out2 = jax.block_until_ready(
        patch_embed_forward(x2, conv_weight, conv_bias, patch_size=patch_size))
    x2_pad = jnp.pad(x2, ((0, 0), (0, 0), (0, 2), (0, 2)))
    ref2 = jax.lax.conv_general_dilated(
        x2_pad, conv_weight, window_strides=patch_size, padding="VALID",
        dimension_numbers=("NCHW", "OIHW", "NCHW"),
    ) + conv_bias.reshape(1, embed_dim, 1, 1)
    assert out2.shape == (B, embed_dim, 5, 5)
    assert jnp.allclose(out2, ref2, atol=1e-4, rtol=1e-4)

    print("KERNEL_OK")
</pallas_src>

<mosaic_0001>
module attributes {stable_mosaic.version = 11 : i64} {
  func.func @_patch_proj_kernel(%arg0: i32, %arg1: i32, %arg2: memref<1x16x64xf32, #tpu.memory_space<vmem>>, %arg3: memref<32x64xf32, #tpu.memory_space<vmem>>, %arg4: memref<32x1xf32, #tpu.memory_space<vmem>>, %arg5: memref<1x32x16xf32, #tpu.memory_space<vmem>>) attributes {dimension_semantics = [#tpu.dimension_semantics<parallel>, #tpu.dimension_semantics<parallel>], iteration_bounds = array<i64: 2, 1>, scalar_prefetch = 0 : i64, scratch_operands = 0 : i64, tpu.core_type = #tpu.core_type<tc>, window_params = [{transform_indices = @transform_0, window_bounds = array<i64: 1, 16, 64>}, {pipeline_mode = #tpu.pipeline_mode<synchronous>, transform_indices = @transform_1, window_bounds = array<i64: 32, 64>}, {pipeline_mode = #tpu.pipeline_mode<synchronous>, transform_indices = @transform_2, window_bounds = array<i64: 32, 1>}, {transform_indices = @transform_3, window_bounds = array<i64: 1, 32, 16>}]} {
    %c0 = arith.constant 0 : index
    %c0_0 = arith.constant 0 : index
    %0 = vector.load %arg3[%c0, %c0_0] : memref<32x64xf32, #tpu.memory_space<vmem>>, vector<32x64xf32>
    %c0_1 = arith.constant 0 : index
    %c0_2 = arith.constant 0 : index
    %c0_3 = arith.constant 0 : index
    %1 = vector.load %arg2[%c0_1, %c0_2, %c0_3] : memref<1x16x64xf32, #tpu.memory_space<vmem>>, vector<1x16x64xf32>
    %2 = vector.shape_cast %1 : vector<1x16x64xf32> to vector<16x64xf32>
    %3 = tpu.transpose %2, [1, 0] : vector<16x64xf32> -> vector<64x16xf32>
    %cst = arith.constant dense<0.000000e+00> : vector<32x16xf32>
    %4 = tpu.matmul %0, %3, %cst {dimension_numbers = #tpu.dot_dimension_numbers<[1], [0], [0], [1], [0, 0, 1, 1], [], []>} : vector<32x64xf32>, vector<64x16xf32>, vector<32x16xf32> -> vector<32x16xf32>
    %c0_4 = arith.constant 0 : index
    %c0_5 = arith.constant 0 : index
    %5 = vector.load %arg4[%c0_4, %c0_5] : memref<32x1xf32, #tpu.memory_space<vmem>>, vector<32x1xf32>
    %6 = vector.broadcast %5 : vector<32x1xf32> to vector<32x16xf32>
    %7 = arith.addf %4, %6 : vector<32x16xf32>
    %c0_6 = arith.constant 0 : index
    %c0_7 = arith.constant 0 : index
    %c0_8 = arith.constant 0 : index
    %8 = vector.load %arg5[%c0_6, %c0_7, %c0_8] : memref<1x32x16xf32, #tpu.memory_space<vmem>>, vector<1x32x16xf32>
    %9 = vector.shape_cast %8 : vector<1x32x16xf32> to vector<32x16xf32>
    %10 = vector.shape_cast %7 : vector<32x16xf32> to vector<1x32x16xf32>
    tpu.vector_store %arg5[%c0_6, %c0_7, %c0_8], %10 {strides = array<i32>} : memref<1x32x16xf32, #tpu.memory_space<vmem>>, vector<1x32x16xf32>,
    return
  }
  func.func @transform_0(%arg0: i32, %arg1: i32) -> (i32, i32, i32) {
    %c0_i32 = arith.constant 0 : i32
    %c0_i32_0 = arith.constant 0 : i32
    return %arg0, %arg1, %c0_i32 : i32, i32, i32
  }
  func.func @transform_1(%arg0: i32, %arg1: i32) -> (i32, i32) {
    %c0_i32 = arith.constant 0 : i32
    %c0_i32_0 = arith.constant 0 : i32
    %c0_i32_1 = arith.constant 0 : i32
    return %c0_i32, %c0_i32_0 : i32, i32
  }
  func.func @transform_2(%arg0: i32, %arg1: i32) -> (i32, i32) {
    %c0_i32 = arith.constant 0 : i32
    %c0_i32_0 = arith.constant 0 : i32
    %c0_i32_1 = arith.constant 0 : i32
    return %c0_i32, %c0_i32_0 : i32, i32
  }
  func.func @transform_3(%arg0: i32, %arg1: i32) -> (i32, i32, i32) {
    %c0_i32 = arith.constant 0 : i32
    %c0_i32_0 = arith.constant 0 : i32
    return %arg0, %c0_i32, %arg1 : i32, i32, i32
  }
}

</mosaic_0001>

<llo_original>
// kernel: patch_embed_forward.1
$region0: #{patch_embed_forward.1}
  #allocation0 [shape = 'u32[]', space=smem, size = 0x4, offset = 0x4, fixed_abs, tag = 'smem constant byte address 0x4 - core index']
  #allocation1 [shape = 'u32[144,128]{1,0:T(1,128)}', space=vmem, size = 0x12000, scoped, tag = 'internal scratch']
  %s0 = inlined_call_operand.vmem [shape: f32[2,16,64], index: 0, kind: input, shape index: {}]
  %s1 = inlined_call_operand.vmem [shape: f32[32,64], index: 1, kind: input, shape index: {}]
  %s2 = inlined_call_operand.vmem [shape: f32[32,1], index: 2, kind: input, shape index: {}]
  %s3 = inlined_call_operand.vmem [shape: f32[2,32,16], index: 3, kind: output, shape index: {}]
  %s4 = sld [smem:[#allocation0]]
  $region45: #{patch_embed_forward.1} parent=0
    _
  %s6 = ssub.s32 1, %s4
  %s7 = scalar_select 0, %s6, %s4
  loop: start=0, step=1, limit=4
  $region2: #{patch_embed_forward.1} parent=0 // loop_pre_header
    _
  $region3: #{patch_embed_forward.1} parent=0 // loop_header
    %s9 = sphi 0, %s13
    %p10 = scmp.ge.s32.totalorder %s9, 4
    %s16 = sphi 0, %s28
    %s17 = sphi 0, %s24
    %s18 = sphi 0, %s16
    %s19 = sphi 0, %s17
    %s20 = sphi 0, %s18
    %s21 = sphi 0, %s19
    %s33 = sphi 0, %s35
    %s36 = sphi 0, %s33
    %s37 = sphi 0, %s36
    %s53 = sphi 0, %s37
    %s57 = sphi 0, %s57
    %s59 = sphi 0, %s57
    %s60 = sphi 0, %s59
    %s74 = sphi 0, %s60
    %s78 = sphi 0, %s78
    %s80 = sphi 0, %s78
    %s81 = sphi 0, %s80
    %s95 = sphi 0, %s81
    %s103 = sphi 0, %s105
    %s106 = sphi 0, %s103
    %s107 = sphi 0, %s106
    %s123 = sphi 0, %s107
  $region4: #{patch_embed_forward.1} parent=0 // loop_header_branch
    %12 = sbr.rel (%p10) target = $region8
  $region5: #{patch_embed_forward.1} parent=0 // loop_body
    %s14 = ssub.s32 %s9, 1
    %s15 = ssub.s32 %s9, 2
    %s22 = sadd.s32 1, %s17
    %p23 = scmp.ge.s32.totalorder %s22, 1
    %s24 = scalar_select %p23, 0, %s22
    %s25 = sadd.s32 1, %s16
    %s26 = scalar_select %p23, %s25, %s16
    %p27 = scmp.ge.s32.totalorder %s26, 2
    %s28 = scalar_select %p27, 0, %s26
    %s29 = ssub.s32 %s16, %s28
    %s30 = ssub.s32 %s17, %s24
    %s31 = sor.u32 %s29, %s30
    %p32 = scmp.eq.s32.totalorder %s31, 0
    %s34 = sadd.s32 %s33, 1
    %s35 = scalar_select %p32, %s33, %s34
    %p38 = pneg %p32
    %p39 = scmp.eq.s32.totalorder %s9, 1
    %p40 = por %p38, %p39
    %p41 = scmp.ne.s32.totalorder %s33, %s36
    %p42 = scmp.eq.s32.totalorder %s9, 0
    %p43 = por %p41, %p42
    %p44 = scmp.ne.s32.totalorder %s33, %s36
    %p45 = scmp.eq.s32.totalorder %s14, 1
    %p46 = por %p44, %p45
    %p47 = scmp.ne.s32.totalorder %s36, %s37
    %p48 = scmp.eq.s32.totalorder %s14, 0
    %p49 = por %p47, %p48
    %p50 = scmp.ne.s32.totalorder %s36, %s37
    %p51 = scmp.eq.s32.totalorder %s15, 1
    %p52 = por %p50, %p51
    %p54 = scmp.ne.s32.totalorder %s37, %s53
    %p55 = scmp.eq.s32.totalorder %s15, 0
    %p56 = por %p54, %p55
    %s58 = sadd.s32 %s57, 1
    %p61 = scmp.eq.s32.totalorder %s9, 1
    %p62 = scmp.ne.s32.totalorder %s57, %s59
    %p63 = scmp.eq.s32.totalorder %s9, 0
    %p64 = por %p62, %p63
    %p65 = scmp.ne.s32.totalorder %s57, %s59
    %p66 = scmp.eq.s32.totalorder %s14, 1
    %p67 = por %p65, %p66
    %p68 = scmp.ne.s32.totalorder %s59, %s60
    %p69 = scmp.eq.s32.totalorder %s14, 0
    %p70 = por %p68, %p69
    %p71 = scmp.ne.s32.totalorder %s59, %s60
    %p72 = scmp.eq.s32.totalorder %s15, 1
    %p73 = por %p71, %p72
    %p75 = scmp.ne.s32.totalorder %s60, %s74
    %p76 = scmp.eq.s32.totalorder %s15, 0
    %p77 = por %p75, %p76
    %s79 = sadd.s32 %s78, 1
    %p82 = scmp.eq.s32.totalorder %s9, 1
    %p83 = scmp.ne.s32.totalorder %s78, %s80
    %p84 = scmp.eq.s32.totalorder %s9, 0
    %p85 = por %p83, %p84
    %p86 = scmp.ne.s32.totalorder %s78, %s80
    %p87 = scmp.eq.s32.totalorder %s14, 1
    %p88 = por %p86, %p87
    %p89 = scmp.ne.s32.totalorder %s80, %s81
    %p90 = scmp.eq.s32.totalorder %s14, 0
    %p91 = por %p89, %p90
    %p92 = scmp.ne.s32.totalorder %s80, %s81
    %p93 = scmp.eq.s32.totalorder %s15, 1
    %p94 = por %p92, %p93
    %p96 = scmp.ne.s32.totalorder %s81, %s95
    %p97 = scmp.eq.s32.totalorder %s15, 0
    %p98 = por %p96, %p97
    %s99 = ssub.s32 %s16, %s28
    %s100 = ssub.s32 %s17, %s24
    %s101 = sor.u32 %s99, %s100
    %p102 = scmp.eq.s32.totalorder %s101, 0
    %s104 = sadd.s32 %s103, 1
    %s105 = scalar_select %p102, %s103, %s104
    %p108 = pneg %p102
    %p109 = scmp.eq.s32.totalorder %s9, 1
    %p110 = por %p108, %p109
    %p111 = scmp.ne.s32.totalorder %s103, %s106
    %p112 = scmp.eq.s32.totalorder %s9, 0
    %p113 = por %p111, %p112
    %p114 = scmp.ne.s32.totalorder %s103, %s106
    %p115 = scmp.eq.s32.totalorder %s14, 1
    %p116 = por %p114, %p115
    %p117 = scmp.ne.s32.totalorder %s106, %s107
    %p118 = scmp.eq.s32.totalorder %s14, 0
    %p119 = por %p117, %p118
    %p120 = scmp.ne.s32.totalorder %s106, %s107
    %p121 = scmp.eq.s32.totalorder %s15, 1
    %p122 = por %p120, %p121
    %p124 = scmp.ne.s32.totalorder %s107, %s123
    %p125 = scmp.eq.s32.totalorder %s15, 0
    %p126 = por %p124, %p125
    %p127 = scmp.le.s32.totalorder 1, %s9
    %p128 = scmp.lt.s32.totalorder %s9, 3
    %p129 = pnand %p127, %p128
    %p130 = pneg %p129
    // Predicated region
    $region9: #{patch_embed_forward.1} parent=5 // pred_check
      _
    $region10: #{patch_embed_forward.1} parent=5 // pred_check_branch
      %132 = sbr.rel (%p129) target = $region12
    $region11: #{patch_embed_forward.1} parent=5 // pred_region
      %s133 = ssub.s32 %s9, 1
      // Predicated region
      $region13: #{patch_embed_forward.1} parent=11 // pred_check
        %p134 = pneg %p70
      $region14: #{patch_embed_forward.1} parent=11 // pred_check_branch
        %136 = sbr.rel (%p134) target = $region16
      $region15: #{patch_embed_forward.1} parent=11 // pred_region
        _
      $region16: #{patch_embed_forward.1} parent=11 // pred_fallthru
        _
      // Predicated region
      $region17: #{patch_embed_forward.1} parent=11 // pred_check
        %p137 = pneg %p91
      $region18: #{patch_embed_forward.1} parent=11 // pred_check_branch
        %139 = sbr.rel (%p137) target = $region20
      $region19: #{patch_embed_forward.1} parent=11 // pred_region
        _
      $region20: #{patch_embed_forward.1} parent=11 // pred_fallthru
        _
    $region12: #{patch_embed_forward.1} parent=5 // pred_fallthru
      _
    %p140 = scmp.lt.s32.totalorder %s9, 2
    // Predicated region
    $region21: #{patch_embed_forward.1} parent=5 // pred_check
      %p141 = pneg %p140
    $region22: #{patch_embed_forward.1} parent=5 // pred_check_branch
      %143 = sbr.rel (%p141) target = $region24
    $region23: #{patch_embed_forward.1} parent=5 // pred_region
      // Predicated region
      $region25: #{patch_embed_forward.1} parent=23 // pred_check
        %p144 = pneg %p43
      $region26: #{patch_embed_forward.1} parent=23 // pred_check_branch
        %146 = sbr.rel (%p144) target = $region28
      $region27: #{patch_embed_forward.1} parent=23 // pred_region
        %s147 = smul.u32 2, %s17
        %p148 = scmp.lt.s32.totalorder %s16, 1
        %s149 = scalar_select %p148, %s16, 1
        %p150 = scmp.lt.s32.totalorder %s147, 1
        %s151 = scalar_select %p150, %s147, 1
        %s152 = smul.addr %s149, 2
        %s153 = sadd.s32 %s151, %s152
        %s154 = smul.addr %s153, 8
        %s155 = scalar_lea.vmem %s0, %s154
        %s156 = smul.u32 2, %s17
      $region28: #{patch_embed_forward.1} parent=23 // pred_fallthru
        _
    $region24: #{patch_embed_forward.1} parent=5 // pred_fallthru
      _
    %p157 = scmp.le.s32.totalorder 1, %s9
    %p158 = scmp.lt.s32.totalorder %s9, 3
    %p159 = pnand %p157, %p158
    %p160 = pneg %p159
    // Predicated region
    $region29: #{patch_embed_forward.1} parent=5 // pred_check
      _
    $region30: #{patch_embed_forward.1} parent=5 // pred_check_branch
      %162 = sbr.rel (%p159) target = $region32
    $region31: #{patch_embed_forward.1} parent=5 // pred_region
      %s163 = ssub.s32 %s9, 1
      %s164 = smul.u32 2, %s19
      %p165 = scmp.lt.s32.totalorder %s18, 1
      %s166 = scalar_select %p165, %s18, 1
      %p167 = scmp.lt.s32.totalorder %s164, 1
      %s168 = scalar_select %p167, %s164, 1
      %s169 = smul.addr %s166, 2
      %s170 = sadd.s32 %s168, %s169
      %s171 = smul.addr %s170, 8
      %s172 = scalar_lea.vmem %s0, %s171
      %p173 = pneg %p49
      %p174 = pneg %p46
      %p175 = pneg %p70
      %p176 = pneg %p67
      %p177 = pneg %p91
      %p178 = pneg %p88
      %p179 = pneg %p119
      %p180 = pneg %p116
      %p181 = scmp.lt.s32.totalorder %s18, 1
      %s182 = scalar_select %p181, %s18, 1
      %p183 = scmp.lt.s32.totalorder %s19, 0
      %s184 = scalar_select %p183, %s19, 0
      %s185 = smul.addr %s182, 4
      %s186 = sadd.s32 %s184, %s185
      %s187 = smul.addr %s186, 8
      %s188 = scalar_lea.vmem %s3, %s187
      %s189 = smul.u32 2, %s19
      %p190 = scmp.lt.s32.totalorder %s18, 1
      %s191 = scalar_select %p190, %s18, 1
      %p192 = scmp.lt.s32.totalorder %s189, 1
      %s193 = scalar_select %p192, %s189, 1
      %s194 = smul.addr %s191, 2
      %s195 = sadd.s32 %s193, %s194
      %s196 = smul.addr %s195, 8
      %s197 = scalar_lea.vmem %s0, %s196
      %s198 = smul.u32 2, %s19
      %p199 = scmp.lt.s32.totalorder %s18, 1
      %s200 = scalar_select %p199, %s18, 1
      %p201 = scmp.lt.s32.totalorder %s19, 0
      %s202 = scalar_select %p201, %s19, 0
      %s203 = smul.addr %s200, 4
      %s204 = sadd.s32 %s202, %s203
      %s205 = smul.addr %s204, 8
      %s206 = scalar_lea.vmem %s3, %s205
      %v207 = vld [vmem:[%s1] sm:$0xff]
      %v208 = vld [vmem:[%s1 + $0x8] sm:$0xff]
      %v209 = vld [vmem:[%s1 + $0x10] sm:$0xff]
      %v210 = vld [vmem:[%s1 + $0x18] sm:$0xff]
      %v211 = vld [vmem:[%s197] sm:$0xff]
      %v212 = vld [vmem:[%s197 + $0x8] sm:$0xff]
      %v213 = vld [vmem:[%s2] sm:$0xff]
      %v214 = vld [vmem:[%s2 + $0x8] sm:$0xff]
      %v215 = vld [vmem:[%s2 + $0x10] sm:$0xff]
      %v216 = vld [vmem:[%s2 + $0x18] sm:$0xff]
      %218 = vset.pattern.permute.xlu0 0
      %219 = vperm.xlu0 %218, %v213
      %v220 = vpop.permute.xlu0 %219
      %223 = vset.pattern.permute.xlu0 0
      %224 = vperm.xlu0 %223, %v214
      %v225 = vpop.permute.xlu0 %224
      %228 = vset.pattern.permute.xlu0 0
      %229 = vperm.xlu0 %228, %v215
      %v230 = vpop.permute.xlu0 %229
      %233 = vset.pattern.permute.xlu0 0
      %234 = vperm.xlu0 %233, %v216
      %v235 = vpop.permute.xlu0 %234
      %vm237 = vcmask 523264
      %v239 = vsel %vm237, %v207, 0
      %v242 = vsel %vm237, %v208, 0
      %v245 = vsel %vm237, %v209, 0
      %v248 = vsel %vm237, %v210, 0
      %v251 = vsel %vm237, %v211, 0
      %v254 = vsel %vm237, %v212, 0
      %256 = vmatprep.subr.mxu0 0.0
      %257 = vmatpush1.xpose.msra.mxu0 %v251
      %258 = vmatprep.subr.mxu0 0.0
      %259 = vmatpush1.xpose.msra.mxu0 %v254
      %260 = vmatprep.subr.mxu0 0.0
      %261 = vmatpush1.xpose.msra.mxu0 0.0
      %262 = vmatprep.subr.mxu0 0.0
      %263 = vmatpush1.xpose.msra.mxu0 0.0
      %264 = vmatprep.subr.mxu0 0.0
      %265 = vmatpush1.xpose.msra.mxu0 0.0
      %266 = vmatprep.subr.mxu0 0.0
      %267 = vmatpush1.xpose.msra.mxu0 0.0
      %268 = vmatprep.subr.mxu0 0.0
      %269 = vmatpush1.xpose.msra.mxu0 0.0
      %270 = vmatprep.subr.mxu0 0.0
      %271 = vmatpush1.xpose.msra.mxu0 0.0
      %272 = vmatprep.subr.mxu0 0.0
      %273 = vmatpush1.xpose.msra.mxu0 0.0
      %274 = vmatprep.subr.mxu0 0.0
      %275 = vmatpush1.xpose.msra.mxu0 0.0
      %276 = vmatprep.subr.mxu0 0.0
      %277 = vmatpush1.xpose.msra.mxu0 0.0
      %278 = vmatprep.subr.mxu0 0.0
      %279 = vmatpush1.xpose.msra.mxu0 0.0
      %280 = vmatprep.subr.mxu0 0.0
      %281 = vmatpush1.xpose.msra.mxu0 0.0
      %282 = vmatprep.subr.mxu0 0.0
      %283 = vmatpush1.xpose.msra.mxu0 0.0
      %284 = vmatprep.subr.mxu0 0.0
      %285 = vmatpush1.xpose.msra.mxu0 0.0
      %286 = vmatprep.subr.mxu0 0.0
      %287 = vmatpush1.xpose.msra.mxu0 0.0
      %288 = vmatprep.subr.mxu0 0.0
      %289 = vmatpush1.xpose.msra.mxu0 0.0
      %290 = vmatprep.subr.mxu0 0.0
      %291 = vmatpush1.xpose.msra.mxu0 0.0
      %292 = vmatprep.subr.mxu0 0.0
      %293 = vmatpush1.xpose.msra.mxu0 0.0
      %294 = vmatprep.subr.mxu0 0.0
      %295 = vmatpush1.xpose.msra.mxu0 0.0
      %296 = vmatprep.subr.mxu0 0.0
      %297 = vmatpush1.xpose.msra.mxu0 0.0
      %298 = vmatprep.subr.mxu0 0.0
      %299 = vmatpush1.xpose.msra.mxu0 0.0
      %300 = vmatprep.subr.mxu0 0.0
      %301 = vmatpush1.xpose.msra.mxu0 0.0
      %302 = vmatprep.subr.mxu0 0.0
      %303 = vmatpush1.xpose.msra.mxu0 0.0
      %304 = vmatprep.subr.mxu0 0.0
      %305 = vmatpush1.xpose.msra.mxu0 0.0
      %306 = vmatprep.subr.mxu0 0.0
      %307 = vmatpush1.xpose.msra.mxu0 0.0
      %308 = vmatprep.subr.mxu0 0.0
      %309 = vmatpush1.xpose.msra.mxu0 0.0
      %310 = vmatprep.subr.mxu0 0.0
      %311 = vmatpush1.xpose.msra.mxu0 0.0
      %312 = vmatprep.subr.mxu0 0.0
      %313 = vmatpush1.xpose.msra.mxu0 0.0
      %314 = vmatprep.subr.mxu0 0.0
      %315 = vmatpush1.xpose.msra.mxu0 0.0
      %316 = vmatprep.subr.mxu0 0.0
      %317 = vmatpush1.xpose.msra.mxu0 0.0
      %318 = vmatprep.subr.mxu0 0.0
      %319 = vmatpush1.xpose.msra.mxu0 0.0
      %320 = vmatprep.mubr.f32.mxu0 0.0
      %321 = vmatmul.mubr.f32.gmra.mrb[0].mxu0 %v239
      %v322 = vpop.f32.mrb[0].mxu0
      %v323 = vadd.f32 %v220, %v322
      %v324 = vpop.f32.mrb[0].mxu0
      %325 = vmatprep.mubr.f32.mxu0 0.0
      %326 = vmatmul.mubr.f32.gmra.mrb[0].mxu0 %v242
      %v327 = vpop.f32.mrb[0].mxu0
      %v328 = vadd.f32 %v225, %v327
      %v329 = vpop.f32.mrb[0].mxu0
      %330 = vmatprep.mubr.f32.mxu0 0.0
      %331 = vmatmul.mubr.f32.gmra.mrb[0].mxu0 %v245
      %v332 = vpop.f32.mrb[0].mxu0
      %v333 = vadd.f32 %v230, %v332
      %v334 = vpop.f32.mrb[0].mxu0
      %335 = vmatprep.mubr.f32.mxu0 0.0
      %336 = vmatmul.mubr.f32.gmra.mrb[0].mxu0 %v248
      %v337 = vpop.f32.mrb[0].mxu0
      %v338 = vadd.f32 %v235, %v337
      %v339 = vpop.f32.mrb[0].mxu0
      %340 = vdwg.mxu0
      %vm341 = vcmask 130048
      %342 = vst.msk [vmem:[%s206] sm:$0xff] %vm341, %v323
      %343 = vst.msk [vmem:[%s206 + $0x8] sm:$0xff] %vm341, %v328
      %344 = vst.msk [vmem:[%s206 + $0x10] sm:$0xff] %vm341, %v333
      %345 = vst.msk [vmem:[%s206 + $0x18] sm:$0xff] %vm341, %v338
      %p346 = scmp.lt.s32.totalorder %s18, 1
      %s347 = scalar_select %p346, %s18, 1
      %p348 = scmp.lt.s32.totalorder %s19, 0
      %s349 = scalar_select %p348, %s19, 0
      %s350 = smul.addr %s347, 4
      %s351 = sadd.s32 %s349, %s350
      %s352 = smul.addr %s351, 8
      %s353 = scalar_lea.vmem %s3, %s352
      // Predicated region
      $region33: #{patch_embed_forward.1} parent=31 // pred_check
        %p354 = pneg %p116
      $region34: #{patch_embed_forward.1} parent=31 // pred_check_branch
        %356 = sbr.rel (%p354) target = $region36
      $region35: #{patch_embed_forward.1} parent=31 // pred_region
        _
      $region36: #{patch_embed_forward.1} parent=31 // pred_fallthru
        _
    $region32: #{patch_embed_forward.1} parent=5 // pred_fallthru
      _
    %p357 = scmp.le.s32.totalorder 2, %s9
    // Predicated region
    $region37: #{patch_embed_forward.1} parent=5 // pred_check
      %p358 = pneg %p357
    $region38: #{patch_embed_forward.1} parent=5 // pred_check_branch
      %360 = sbr.rel (%p358) target = $region40
    $region39: #{patch_embed_forward.1} parent=5 // pred_region
      %s361 = ssub.s32 %s9, 2
      // Predicated region
      $region41: #{patch_embed_forward.1} parent=39 // pred_check
        %p362 = pneg %p122
      $region42: #{patch_embed_forward.1} parent=39 // pred_check_branch
        %364 = sbr.rel (%p362) target = $region44
      $region43: #{patch_embed_forward.1} parent=39 // pred_region
        %p365 = scmp.lt.s32.totalorder %s20, 1
        %s366 = scalar_select %p365, %s20, 1
        %p367 = scmp.lt.s32.totalorder %s21, 0
        %s368 = scalar_select %p367, %s21, 0
        %s369 = smul.addr %s366, 4
        %s370 = sadd.s32 %s368, %s369
        %s371 = smul.addr %s370, 8
        %s372 = scalar_lea.vmem %s3, %s371
      $region44: #{patch_embed_forward.1} parent=39 // pred_fallthru
        _
    $region40: #{patch_embed_forward.1} parent=5 // pred_fallthru
      _
  $region6: #{patch_embed_forward.1} parent=0 // loop_footer
    %s13 = sadd.s32 1, %s9
  $region7: #{patch_embed_forward.1} parent=0 // loop_footer_branch
    %8 = sbr.rel target = $region3
  $region8: #{patch_embed_forward.1} parent=0 // loop_exit
    _

</llo_original>
